<compile_context>
chip_gen: v7x
topology: tpu7x:2x2x1
jax: 0.10.0
libtpu: 0.0.40
codegen_flags: <defaults>
</compile_context>

<pallas_src>
import functools
import math

import jax
import jax.numpy as jnp
from jax.experimental import pallas as pl
from jax.experimental.pallas import tpu as pltpu

NEG_BIG = -1e30  # large finite negative (safe under softmax/logsumexp, no NaN)


# ----------------------------------------------------------------------------- kernel
def gpt_v3_kernel(idx_ref, tgt_ref, emb_ref, pos_ref, wqkv_ref, wlm_ref, blm_ref,
                  bias_ref, logits_ref, loss_ref, *, B, V):
    BT = idx_ref.shape[0]          # B*T (batch folded into the matmul M dim)
    V_pad, C = emb_ref.shape       # vocab padded to a multiple of 128 (lane-dense)

    idx = idx_ref[...]             # (BT, 1) int32
    tgt = tgt_ref[...]             # (BT, 1) int32

    # --- token embedding lookup: lane-dense one-hot matmul over V_pad columns ---
    colv = jax.lax.broadcasted_iota(jnp.int32, (BT, V_pad), 1)          # (BT, V_pad)
    onehot = (colv == idx).astype(jnp.float32)                          # (BT, V_pad)
    tok_emb = jnp.dot(onehot, emb_ref[...],
                      preferred_element_type=jnp.float32)               # (BT, C)

    # --- add sinusoidal positional encodings: (T, C) tiled in-kernel to (BT, C) ---
    pos = pos_ref[...]                                                  # (T, C)
    pos_bt = jnp.concatenate([pos] * B, axis=0) if B > 1 else pos       # (BT, C)
    x = tok_emb + pos_bt

    # --- contextualizer: fused q/k/v (single MXU launch), batch folded in M ---
    qkv = jnp.dot(x, wqkv_ref[...], preferred_element_type=jnp.float32)  # (BT, 3C)
    q = qkv[:, :C]
    k = qkv[:, C:2 * C]
    v = qkv[:, 2 * C:]

    wei = jnp.dot(q, k.T, preferred_element_type=jnp.float32) * (C ** -0.5)
    wei = wei + bias_ref[...]      # precomputed block-diagonal + causal additive bias

    wei = wei - jnp.max(wei, axis=-1, keepdims=True)
    p = jnp.exp(wei)
    p = p * pl.reciprocal(jnp.sum(p, axis=-1, keepdims=True), approx=True)
    ctx = jnp.dot(p, v, preferred_element_type=jnp.float32)             # (BT, C)

    # --- lm_head: logits = ctx @ W (C, V_pad) + b ; padded cols are exactly 0 ---
    logits = jnp.dot(ctx, wlm_ref[...],
                     preferred_element_type=jnp.float32) + blm_ref[...]  # (BT, V_pad)
    logits_ref[...] = logits                                             # lane-dense store

    # --- cross-entropy over the true vocab only (mask padded columns) ---
    l_m = jnp.where(colv < V, logits, NEG_BIG)
    m = jnp.max(l_m, axis=-1, keepdims=True)
    lse = jnp.log(jnp.sum(jnp.exp(l_m - m), axis=-1, keepdims=True)) + m   # (BT, 1)
    tgt_logit = jnp.sum(jnp.where(colv == tgt, logits, 0.0),
                        axis=-1, keepdims=True)                            # (BT, 1)
    per_tok = lse - tgt_logit                                              # (BT, 1)
    # mean over B*T tokens (F.cross_entropy reduction='mean'), reduced in-kernel,
    # stored lane-dense with only [0, 0] meaningful
    mean_loss = jnp.sum(per_tok, axis=0, keepdims=True) * (1.0 / BT)       # (1, 1)
    loss_ref[...] = jnp.broadcast_to(mean_loss, loss_ref.shape)            # (1, 128)


# ----------------------------------------------------------------------------- glue
def pos_encodings(block_size: int, embed_size: int) -> jnp.ndarray:
    """Mirror of GPTVer3.pos_encodings (sin on even cols, cos on odd cols)."""
    positions = jnp.arange(block_size, dtype=jnp.float32)[:, None]            # (T, 1)
    freqs = 0.0001 ** (jnp.arange(0, embed_size, 2, dtype=jnp.float32)
                       / embed_size)[None, :]                                 # (1, C//2)
    enc = jnp.zeros((block_size, embed_size), dtype=jnp.float32)
    enc = enc.at[:, ::2].set(jnp.sin(freqs * positions))
    enc = enc.at[:, 1::2].set(jnp.cos(freqs * positions))
    return enc


def init_params(key, vocab_size: int, embed_size: int):
    k_emb, k_q, k_k, k_v, k_w, k_b = jax.random.split(key, 6)
    bound = 1.0 / math.sqrt(embed_size)
    return {
        # nn.Embedding default init ~ N(0, 1)
        "emb": jax.random.normal(k_emb, (vocab_size, embed_size), jnp.float32),
        # attention head linears (no bias), stored as (C, C)
        "wq": jax.random.uniform(k_q, (embed_size, embed_size), jnp.float32, -bound, bound),
        "wk": jax.random.uniform(k_k, (embed_size, embed_size), jnp.float32, -bound, bound),
        "wv": jax.random.uniform(k_v, (embed_size, embed_size), jnp.float32, -bound, bound),
        # lm_head stored pre-transposed (C, V) + bias (1, V); matches nn.Linear(C, V)
        "wlm": jax.random.uniform(k_w, (embed_size, vocab_size), jnp.float32, -bound, bound),
        "blm": jax.random.uniform(k_b, (1, vocab_size), jnp.float32, -bound, bound),
    }


def gpt_v3_forward(idx, targets, params):
    """Returns (logits (B,T,V), loss scalar) — same semantics as GPTVer3.forward."""
    B, T = idx.shape
    V, C = params["emb"].shape
    BT = B * T
    V_pad = ((V + 127) // 128) * 128            # lane-dense vocab

    # zero-pad embedding + lm_head to V_pad (padded logits columns are exactly 0)
    emb_pad = jnp.zeros((V_pad, C), jnp.float32).at[:V, :].set(params["emb"])
    wlm_pad = jnp.zeros((C, V_pad), jnp.float32).at[:, :V].set(params["wlm"])
    blm_pad = jnp.zeros((1, V_pad), jnp.float32).at[:, :V].set(params["blm"])

    # fused qkv weight: one MXU launch in-kernel
    wqkv = jnp.concatenate([params["wq"], params["wk"], params["wv"]], axis=1)  # (C, 3C)

    # precomputed block-diagonal (same batch) + causal additive bias; diag kept -> no NaN
    row = jnp.arange(BT)[:, None]
    col = jnp.arange(BT)[None, :]
    keep = (col // T == row // T) & (col <= row)
    attn_bias = jnp.where(keep, 0.0, NEG_BIG).astype(jnp.float32)               # (BT, BT)

    pos = pos_encodings(T, C)                                                   # (T, C)

    idx2 = idx.astype(jnp.int32).reshape(BT, 1)
    # clamp targets into [0, V) so the (colv == tgt) gather can never hit a padded column
    tgt2 = jnp.clip(targets.astype(jnp.int32), 0, V - 1).reshape(BT, 1)

    kernel = functools.partial(gpt_v3_kernel, B=B, V=V)
    vmem_spec = lambda: pl.BlockSpec(memory_space=pltpu.MemorySpace.VMEM)

    logits_pad, loss = pl.pallas_call(
        kernel,
        out_shape=(
            jax.ShapeDtypeStruct((BT, V_pad), jnp.float32),
            jax.ShapeDtypeStruct((1, 128), jnp.float32),   # lane-dense loss slab
        ),
        # no grid: whole arrays resident in VMEM once, no pipeline double-buffering
        in_specs=[vmem_spec() for _ in range(8)],
        out_specs=(vmem_spec(), vmem_spec()),
    )(idx2, tgt2, emb_pad, pos, wqkv, wlm_pad, blm_pad, attn_bias)

    logits = logits_pad[:, :V].reshape(B, T, V)
    return logits, loss[0, 0]


# ----------------------------------------------------------------------------- reference
def gpt_v3_reference(idx, targets, params):
    B, T = idx.shape
    V, C = params["emb"].shape
    x = params["emb"][idx] + pos_encodings(T, C)[None]                 # (B, T, C)
    q = x @ params["wq"]; k = x @ params["wk"]; v = x @ params["wv"]
    wei = jnp.einsum("btc,bsc->bts", q, k) * (C ** -0.5)
    mask = jnp.tril(jnp.ones((T, T), bool))
    wei = jnp.where(mask[None], wei, -jnp.inf)
    p = jax.nn.softmax(wei, axis=-1)
    ctx = jnp.einsum("bts,bsc->btc", p, v)
    logits = ctx @ params["wlm"] + params["blm"][0]
    lse = jax.nn.logsumexp(logits, axis=-1)
    tgt_logit = jnp.take_along_axis(logits, targets[..., None], axis=-1)[..., 0]
    loss = jnp.mean(lse - tgt_logit)
    return logits, loss


# TODO(synk): generate() (autoregressive torch.multinomial sampling loop) is a
# host-side loop, not part of the kernel forward pass; it is not implemented.

if __name__ == "__main__":
    B, T, C, V = 2, 8, 32, 64           # batch, block_size, embed_size, vocab_size

    key = jax.random.PRNGKey(0)
    k_params, k_idx, k_tgt = jax.random.split(key, 3)
    params = init_params(k_params, V, C)
    idx = jax.random.randint(k_idx, (B, T), 0, V, dtype=jnp.int32)
    targets = jax.random.randint(k_tgt, (B, T), 0, V, dtype=jnp.int32)

    logits, loss = gpt_v3_forward(idx, targets, params)
    jax.block_until_ready((logits, loss))

    ref_logits, ref_loss = gpt_v3_reference(idx, targets, params)
    assert logits.shape == (B, T, V)
    assert jnp.allclose(logits, ref_logits, rtol=5e-2, atol=1e-1), "logits mismatch"
    assert jnp.allclose(loss, ref_loss, rtol=5e-2, atol=1e-1), "loss mismatch"

    print("KERNEL_OK")
</pallas_src>

<mosaic_0001>
module attributes {stable_mosaic.version = 11 : i64} {
  func.func @gpt_v3_kernel(%arg0: memref<16x1xi32, #tpu.memory_space<vmem>>, %arg1: memref<16x1xi32, #tpu.memory_space<vmem>>, %arg2: memref<128x32xf32, #tpu.memory_space<vmem>>, %arg3: memref<8x32xf32, #tpu.memory_space<vmem>>, %arg4: memref<32x96xf32, #tpu.memory_space<vmem>>, %arg5: memref<32x128xf32, #tpu.memory_space<vmem>>, %arg6: memref<1x128xf32, #tpu.memory_space<vmem>>, %arg7: memref<16x16xf32, #tpu.memory_space<vmem>>, %arg8: memref<16x128xf32, #tpu.memory_space<vmem>>, %arg9: memref<1x128xf32, #tpu.memory_space<vmem>>) attributes {dimension_semantics = [], scalar_prefetch = 0 : i64, scratch_operands = 0 : i64, tpu.core_type = #tpu.core_type<tc>} {
    %c0 = arith.constant 0 : index
    %c0_0 = arith.constant 0 : index
    %0 = vector.load %arg0[%c0, %c0_0] : memref<16x1xi32, #tpu.memory_space<vmem>>, vector<16x1xi32>
    %c0_1 = arith.constant 0 : index
    %c0_2 = arith.constant 0 : index
    %1 = vector.load %arg1[%c0_1, %c0_2] : memref<16x1xi32, #tpu.memory_space<vmem>>, vector<16x1xi32>
    %2 = tpu.iota {dimensions = array<i32: 1>} : vector<16x128xi32>
    %3 = vector.broadcast %0 : vector<16x1xi32> to vector<16x128xi32>
    %4 = arith.cmpi eq, %2, %3 : vector<16x128xi32>
    %5 = arith.extui %4 : vector<16x128xi1> to vector<16x128xi32>
    %6 = arith.sitofp %5 : vector<16x128xi32> to vector<16x128xf32>
    %c0_3 = arith.constant 0 : index
    %c0_4 = arith.constant 0 : index
    %7 = vector.load %arg2[%c0_3, %c0_4] : memref<128x32xf32, #tpu.memory_space<vmem>>, vector<128x32xf32>
    %cst = arith.constant dense<0.000000e+00> : vector<16x32xf32>
    %8 = tpu.matmul %6, %7, %cst {dimension_numbers = #tpu.dot_dimension_numbers<[1], [0], [0], [1], [0, 0, 1, 1], [], []>} : vector<16x128xf32>, vector<128x32xf32>, vector<16x32xf32> -> vector<16x32xf32>
    %c0_5 = arith.constant 0 : index
    %c0_6 = arith.constant 0 : index
    %9 = vector.load %arg3[%c0_5, %c0_6] : memref<8x32xf32, #tpu.memory_space<vmem>>, vector<8x32xf32>
    %10 = tpu.concatenate %9, %9 in 0 : vector<8x32xf32>, vector<8x32xf32> -> vector<16x32xf32>
    %11 = arith.addf %8, %10 : vector<16x32xf32>
    %c0_7 = arith.constant 0 : index
    %c0_8 = arith.constant 0 : index
    %12 = vector.load %arg4[%c0_7, %c0_8] : memref<32x96xf32, #tpu.memory_space<vmem>>, vector<32x96xf32>
    %cst_9 = arith.constant dense<0.000000e+00> : vector<16x96xf32>
    %13 = tpu.matmul %11, %12, %cst_9 {dimension_numbers = #tpu.dot_dimension_numbers<[1], [0], [0], [1], [0, 0, 1, 1], [], []>} : vector<16x32xf32>, vector<32x96xf32>, vector<16x96xf32> -> vector<16x96xf32>
    %14 = vector.extract_strided_slice %13 {offsets = [0, 0], sizes = [16, 32], strides = [1, 1]} : vector<16x96xf32> to vector<16x32xf32>
    %15 = vector.extract_strided_slice %13 {offsets = [0, 32], sizes = [16, 32], strides = [1, 1]} : vector<16x96xf32> to vector<16x32xf32>
    %16 = vector.extract_strided_slice %13 {offsets = [0, 64], sizes = [16, 32], strides = [1, 1]} : vector<16x96xf32> to vector<16x32xf32>
    %17 = tpu.transpose %15, [1, 0] : vector<16x32xf32> -> vector<32x16xf32>
    %cst_10 = arith.constant dense<0.000000e+00> : vector<16x16xf32>
    %18 = tpu.matmul %14, %17, %cst_10 {dimension_numbers = #tpu.dot_dimension_numbers<[1], [0], [0], [1], [0, 0, 1, 1], [], []>} : vector<16x32xf32>, vector<32x16xf32>, vector<16x16xf32> -> vector<16x16xf32>
    %cst_11 = arith.constant 0.176776692 : f32
    %19 = vector.broadcast %cst_11 : f32 to vector<16x16xf32>
    %20 = arith.mulf %18, %19 : vector<16x16xf32>
    %c0_12 = arith.constant 0 : index
    %c0_13 = arith.constant 0 : index
    %21 = vector.load %arg7[%c0_12, %c0_13] : memref<16x16xf32, #tpu.memory_space<vmem>>, vector<16x16xf32>
    %22 = arith.addf %20, %21 : vector<16x16xf32>
    %cst_14 = arith.constant dense<0xFF800000> : vector<16xf32>
    %23 = vector.multi_reduction <maximumf>, %22, %cst_14 [1] : vector<16x16xf32> to vector<16xf32>
    %24 = vector.shape_cast %23 : vector<16xf32> to vector<16x1xf32>
    %25 = vector.broadcast %24 : vector<16x1xf32> to vector<16x16xf32>
    %26 = arith.subf %22, %25 : vector<16x16xf32>
    %27 = math.exp %26 : vector<16x16xf32>
    %cst_15 = arith.constant dense<0.000000e+00> : vector<16xf32>
    %28 = vector.multi_reduction <add>, %27, %cst_15 [1] : vector<16x16xf32> to vector<16xf32>
    %29 = vector.shape_cast %28 : vector<16xf32> to vector<16x1xf32>
    %30 = tpu.reciprocal %29 {approx = true} : vector<16x1xf32> -> vector<16x1xf32>
    %31 = vector.broadcast %30 : vector<16x1xf32> to vector<16x16xf32>
    %32 = arith.mulf %27, %31 : vector<16x16xf32>
    %cst_16 = arith.constant dense<0.000000e+00> : vector<16x32xf32>
    %33 = tpu.matmul %32, %16, %cst_16 {dimension_numbers = #tpu.dot_dimension_numbers<[1], [0], [0], [1], [0, 0, 1, 1], [], []>} : vector<16x16xf32>, vector<16x32xf32>, vector<16x32xf32> -> vector<16x32xf32>
    %c0_17 = arith.constant 0 : index
    %c0_18 = arith.constant 0 : index
    %34 = vector.load %arg5[%c0_17, %c0_18] : memref<32x128xf32, #tpu.memory_space<vmem>>, vector<32x128xf32>
    %cst_19 = arith.constant dense<0.000000e+00> : vector<16x128xf32>
    %35 = tpu.matmul %33, %34, %cst_19 {dimension_numbers = #tpu.dot_dimension_numbers<[1], [0], [0], [1], [0, 0, 1, 1], [], []>} : vector<16x32xf32>, vector<32x128xf32>, vector<16x128xf32> -> vector<16x128xf32>
    %c0_20 = arith.constant 0 : index
    %c0_21 = arith.constant 0 : index
    %36 = vector.load %arg6[%c0_20, %c0_21] : memref<1x128xf32, #tpu.memory_space<vmem>>, vector<1x128xf32>
    %37 = vector.broadcast %36 : vector<1x128xf32> to vector<16x128xf32>
    %38 = arith.addf %35, %37 : vector<16x128xf32>
    %c0_22 = arith.constant 0 : index
    %c0_23 = arith.constant 0 : index
    %39 = vector.load %arg8[%c0_22, %c0_23] : memref<16x128xf32, #tpu.memory_space<vmem>>, vector<16x128xf32>
    tpu.vector_store %arg8[%c0_22, %c0_23], %38 {strides = array<i32>} : memref<16x128xf32, #tpu.memory_space<vmem>>, vector<16x128xf32>,
    %c64_i32 = arith.constant 64 : i32
    %40 = vector.broadcast %c64_i32 : i32 to vector<16x128xi32>
    %41 = arith.cmpi slt, %2, %40 : vector<16x128xi32>
    %cst_24 = arith.constant -1.000000e+30 : f32
    %42 = vector.broadcast %cst_24 : f32 to vector<16x128xf32>
    %43 = arith.select %41, %38, %42 : vector<16x128xi1>, vector<16x128xf32>
    %cst_25 = arith.constant dense<0xFF800000> : vector<16xf32>
    %44 = vector.multi_reduction <maximumf>, %43, %cst_25 [1] : vector<16x128xf32> to vector<16xf32>
    %45 = vector.shape_cast %44 : vector<16xf32> to vector<16x1xf32>
    %46 = vector.broadcast %45 : vector<16x1xf32> to vector<16x128xf32>
    %47 = arith.subf %43, %46 : vector<16x128xf32>
    %48 = math.exp %47 : vector<16x128xf32>
    %cst_26 = arith.constant dense<0.000000e+00> : vector<16xf32>
    %49 = vector.multi_reduction <add>, %48, %cst_26 [1] : vector<16x128xf32> to vector<16xf32>
    %50 = vector.shape_cast %49 : vector<16xf32> to vector<16x1xf32>
    %51 = math.log %50 : vector<16x1xf32>
    %52 = arith.addf %51, %45 : vector<16x1xf32>
    %53 = vector.broadcast %1 : vector<16x1xi32> to vector<16x128xi32>
    %54 = arith.cmpi eq, %2, %53 : vector<16x128xi32>
    %cst_27 = arith.constant 0.000000e+00 : f32
    %55 = vector.broadcast %cst_27 : f32 to vector<16x128xf32>
    %56 = arith.select %54, %38, %55 : vector<16x128xi1>, vector<16x128xf32>
    %cst_28 = arith.constant dense<0.000000e+00> : vector<16xf32>
    %57 = vector.multi_reduction <add>, %56, %cst_28 [1] : vector<16x128xf32> to vector<16xf32>
    %58 = vector.shape_cast %57 : vector<16xf32> to vector<16x1xf32>
    %59 = arith.subf %52, %58 : vector<16x1xf32>
    %cst_29 = arith.constant dense<0.000000e+00> : vector<1xf32>
    %60 = vector.multi_reduction <add>, %59, %cst_29 [0] : vector<16x1xf32> to vector<1xf32>
    %61 = vector.shape_cast %60 : vector<1xf32> to vector<1x1xf32>
    %cst_30 = arith.constant 6.250000e-02 : f32
    %62 = vector.broadcast %cst_30 : f32 to vector<1x1xf32>
    %63 = arith.mulf %61, %62 : vector<1x1xf32>
    %64 = vector.shape_cast %63 : vector<1x1xf32> to vector<1x1xf32>
    %65 = vector.broadcast %64 : vector<1x1xf32> to vector<1x128xf32>
    %c0_31 = arith.constant 0 : index
    %c0_32 = arith.constant 0 : index
    %66 = vector.load %arg9[%c0_31, %c0_32] : memref<1x128xf32, #tpu.memory_space<vmem>>, vector<1x128xf32>
    tpu.vector_store %arg9[%c0_31, %c0_32], %65 {strides = array<i32>} : memref<1x128xf32, #tpu.memory_space<vmem>>, vector<1x128xf32>,
    return
  }
}

</mosaic_0001>

<llo_original>
// kernel: tpu_custom_call.1
$region0: #{tpu_custom_call.1}
  #allocation0 [shape = 'u32[]', space=smem, size = 0x4, offset = 0x4, fixed_abs, tag = 'smem constant byte address 0x4 - core index']
  #allocation1 [shape = 'u32[144,128]{1,0:T(1,128)}', space=vmem, size = 0x12000, scoped, tag = 'internal scratch']
  %s0 = inlined_call_operand.vmem [shape: s32[16,1], index: 0, kind: input, shape index: {}]
  %s1 = inlined_call_operand.vmem [shape: s32[16,1], index: 1, kind: input, shape index: {}]
  %s2 = inlined_call_operand.vmem [shape: f32[128,32], index: 2, kind: input, shape index: {}]
  %s3 = inlined_call_operand.vmem [shape: f32[8,32], index: 3, kind: input, shape index: {}]
  %s4 = inlined_call_operand.vmem [shape: f32[32,96], index: 4, kind: input, shape index: {}]
  %s5 = inlined_call_operand.vmem [shape: f32[32,128], index: 5, kind: input, shape index: {}]
  %s6 = inlined_call_operand.vmem [shape: f32[1,128], index: 6, kind: input, shape index: {}]
  %s7 = inlined_call_operand.vmem [shape: f32[16,16], index: 7, kind: input, shape index: {}]
  %s8 = inlined_call_operand.hbm [shape: f32[16,128], index: 8, kind: output, shape index: {0}]
  %s9 = inlined_call_operand.hbm [shape: f32[1,128], index: 9, kind: output, shape index: {1}]
  %10 = xla_tuple %s8, %s9
  %s11 = sld [smem:[#allocation0]]
  $region50: #{tpu_custom_call.1} parent=0
    _
  %s13 = ssub.s32 1, %s11
  %s14 = scalar_select 0, %s13, %s11
  $region1: #{tpu_custom_call.1} parent=0
    #allocation2 [shape = 'u8[8192]{0}', space=vmem, size = 0x2000, scoped, tag = 'output window, operand 0, single buffered']
    #allocation3 [shape = 's32[1]{0}', space=sflag, size = 0x4, scoped, tag = 'scoped memory for tpu_custom_call.1']
    #allocation4 [shape = 'u8[512]{0}', space=vmem, size = 0x400, scoped, tag = 'output window, operand 1, single buffered']
    #allocation5 [shape = 's32[1]{0}', space=sflag, size = 0x4, scoped, tag = 'scoped memory for tpu_custom_call.1']
    %15 = vsyncpa [#allocation3], 0
    %16 = vsyncpa [#allocation5], 0
    // Predicated region
    $region2: #{tpu_custom_call.1} parent=1 // pred_check
      _
    $region3: #{tpu_custom_call.1} parent=1 // pred_check_branch
      %18 = sbr.rel (0) target = $region5
    $region4: #{tpu_custom_call.1} parent=1 // pred_region
      _
    $region5: #{tpu_custom_call.1} parent=1 // pred_fallthru
      _
    // Predicated region
    $region6: #{tpu_custom_call.1} parent=1 // pred_check
      _
    $region7: #{tpu_custom_call.1} parent=1 // pred_check_branch
      %20 = sbr.rel (0) target = $region9
    $region8: #{tpu_custom_call.1} parent=1 // pred_region
      _
    $region9: #{tpu_custom_call.1} parent=1 // pred_fallthru
      _
    // Predicated region
    $region10: #{tpu_custom_call.1} parent=1 // pred_check
      _
    $region11: #{tpu_custom_call.1} parent=1 // pred_check_branch
      %22 = sbr.rel (0) target = $region13
    $region12: #{tpu_custom_call.1} parent=1 // pred_region
      _
    $region13: #{tpu_custom_call.1} parent=1 // pred_fallthru
      _
    // Predicated region
    $region14: #{tpu_custom_call.1} parent=1 // pred_check
      _
    $region15: #{tpu_custom_call.1} parent=1 // pred_check_branch
      %24 = sbr.rel (0) target = $region17
    $region16: #{tpu_custom_call.1} parent=1 // pred_region
      _
    $region17: #{tpu_custom_call.1} parent=1 // pred_fallthru
      _
    // Predicated region
    $region18: #{tpu_custom_call.1} parent=1 // pred_check
      _
    $region19: #{tpu_custom_call.1} parent=1 // pred_check_branch
      %26 = sbr.rel (0) target = $region21
    $region20: #{tpu_custom_call.1} parent=1 // pred_region
      _
    $region21: #{tpu_custom_call.1} parent=1 // pred_fallthru
      _
    // Predicated region
    $region22: #{tpu_custom_call.1} parent=1 // pred_check
      _
    $region23: #{tpu_custom_call.1} parent=1 // pred_check_branch
      %28 = sbr.rel (0) target = $region25
    $region24: #{tpu_custom_call.1} parent=1 // pred_region
      _
    $region25: #{tpu_custom_call.1} parent=1 // pred_fallthru
      _
    // Predicated region
    $region26: #{tpu_custom_call.1} parent=1 // pred_check
      _
    $region27: #{tpu_custom_call.1} parent=1 // pred_check_branch
      %30 = sbr.rel (0) target = $region29
    $region28: #{tpu_custom_call.1} parent=1 // pred_region
      _
    $region29: #{tpu_custom_call.1} parent=1 // pred_fallthru
      _
    // Predicated region
    $region30: #{tpu_custom_call.1} parent=1 // pred_check
      _
    $region31: #{tpu_custom_call.1} parent=1 // pred_check_branch
      %32 = sbr.rel (0) target = $region33
    $region32: #{tpu_custom_call.1} parent=1 // pred_region
      _
    $region33: #{tpu_custom_call.1} parent=1 // pred_fallthru
      _
    %v33 = vld [vmem:[%s0] sm:$0xff]
    %v34 = vld [vmem:[%s0 + $0x8] sm:$0xff]
    %v35 = vld [vmem:[%s1] sm:$0xff]
    %v36 = vld [vmem:[%s1 + $0x8] sm:$0xff]
    %v37 = vlaneseq
    %v38 = vand.u32 %v37, 127
    %39 = vset.pattern.permute.xlu0 0
    %40 = vperm.xlu0 %39, %v33
    %v41 = vpop.permute.xlu0 %40
    %42 = vset.pattern.permute.xlu0 0
    %43 = vperm.xlu0 %42, %v34
    %v44 = vpop.permute.xlu0 %43
    %vm45 = vcmp.eq.s32.totalorder %v38, %v41
    %vm46 = vcmp.eq.s32.totalorder %v38, %v44
    %v47 = vsel %vm45, 1, 0
    %v48 = vsel %vm46, 1, 0
    %v49 = vcvt.s32.f32 %v47
    %v50 = vcvt.s32.f32 %v48
    %v51 = vld [vmem:[%s2] sm:$0xff]
    %v52 = vld [vmem:[%s2 + $0x8] sm:$0xff]
    %v53 = vld [vmem:[%s2 + $0x10] sm:$0xff]
    %v54 = vld [vmem:[%s2 + $0x18] sm:$0xff]
    %v55 = vld [vmem:[%s2 + $0x20] sm:$0xff]
    %v56 = vld [vmem:[%s2 + $0x28] sm:$0xff]
    %v57 = vld [vmem:[%s2 + $0x30] sm:$0xff]
    %v58 = vld [vmem:[%s2 + $0x38] sm:$0xff]
    %v59 = vld [vmem:[%s2 + $0x40] sm:$0xff]
    %v60 = vld [vmem:[%s2 + $0x48] sm:$0xff]
    %v61 = vld [vmem:[%s2 + $0x50] sm:$0xff]
    %v62 = vld [vmem:[%s2 + $0x58] sm:$0xff]
    %v63 = vld [vmem:[%s2 + $0x60] sm:$0xff]
    %v64 = vld [vmem:[%s2 + $0x68] sm:$0xff]
    %v65 = vld [vmem:[%s2 + $0x70] sm:$0xff]
    %v66 = vld [vmem:[%s2 + $0x78] sm:$0xff]
    %v67 = vld [vmem:[%s3] sm:$0xff]
    %68 = vmatprep.subr.mxu0 0.0
    %69 = vmatpush1.msra.mxu0 %v51
    %70 = vmatprep.subr.mxu0 0.0
    %71 = vmatpush1.msra.mxu0 %v52
    %72 = vmatprep.subr.mxu0 0.0
    %73 = vmatpush1.msra.mxu0 %v53
    %74 = vmatprep.subr.mxu0 0.0
    %75 = vmatpush1.msra.mxu0 %v54
    %76 = vmatprep.subr.mxu0 0.0
    %77 = vmatpush1.msra.mxu0 %v55
    %78 = vmatprep.subr.mxu0 0.0
    %79 = vmatpush1.msra.mxu0 %v56
    %80 = vmatprep.subr.mxu0 0.0
    %81 = vmatpush1.msra.mxu0 %v57
    %82 = vmatprep.subr.mxu0 0.0
    %83 = vmatpush1.msra.mxu0 %v58
    %84 = vmatprep.subr.mxu0 0.0
    %85 = vmatpush1.msra.mxu0 %v59
    %86 = vmatprep.subr.mxu0 0.0
    %87 = vmatpush1.msra.mxu0 %v60
    %88 = vmatprep.subr.mxu0 0.0
    %89 = vmatpush1.msra.mxu0 %v61
    %90 = vmatprep.subr.mxu0 0.0
    %91 = vmatpush1.msra.mxu0 %v62
    %92 = vmatprep.subr.mxu0 0.0
    %93 = vmatpush1.msra.mxu0 %v63
    %94 = vmatprep.subr.mxu0 0.0
    %95 = vmatpush1.msra.mxu0 %v64
    %96 = vmatprep.subr.mxu0 0.0
    %97 = vmatpush1.msra.mxu0 %v65
    %98 = vmatprep.subr.mxu0 0.0
    %99 = vmatpush1.msra.mxu0 %v66
    %100 = vmatprep.subr.mxu0 0.0
    %101 = vmatpush1.msra.mxu0 0.0
    %102 = vmatprep.subr.mxu0 0.0
    %103 = vmatpush1.msra.mxu0 0.0
    %104 = vmatprep.subr.mxu0 0.0
    %105 = vmatpush1.msra.mxu0 0.0
    %106 = vmatprep.subr.mxu0 0.0
    %107 = vmatpush1.msra.mxu0 0.0
    %108 = vmatprep.subr.mxu0 0.0
    %109 = vmatpush1.msra.mxu0 0.0
    %110 = vmatprep.subr.mxu0 0.0
    %111 = vmatpush1.msra.mxu0 0.0
    %112 = vmatprep.subr.mxu0 0.0
    %113 = vmatpush1.msra.mxu0 0.0
    %114 = vmatprep.subr.mxu0 0.0
    %115 = vmatpush1.msra.mxu0 0.0
    %116 = vmatprep.subr.mxu0 0.0
    %117 = vmatpush1.msra.mxu0 0.0
    %118 = vmatprep.subr.mxu0 0.0
    %119 = vmatpush1.msra.mxu0 0.0
    %120 = vmatprep.subr.mxu0 0.0
    %121 = vmatpush1.msra.mxu0 0.0
    %122 = vmatprep.subr.mxu0 0.0
    %123 = vmatpush1.msra.mxu0 0.0
    %124 = vmatprep.subr.mxu0 0.0
    %125 = vmatpush1.msra.mxu0 0.0
    %126 = vmatprep.subr.mxu0 0.0
    %127 = vmatpush1.msra.mxu0 0.0
    %128 = vmatprep.subr.mxu0 0.0
    %129 = vmatpush1.msra.mxu0 0.0
    %130 = vmatprep.subr.mxu0 0.0
    %131 = vmatpush1.msra.mxu0 0.0
    %132 = vmatprep.mubr.f32.mxu0 0.0
    %133 = vmatmul.mubr.f32.gmra.mrb[0].mxu0 %v49
    %v134 = vpop.f32.mrb[0].mxu0
    %v135 = vadd.f32 %v67, %v134
    %v136 = vpop.f32.mrb[0].mxu0
    %137 = vmatprep.mubr.f32.mxu0 0.0
    %138 = vmatmul.mubr.f32.gmra.mrb[0].mxu0 %v50
    %v139 = vpop.f32.mrb[0].mxu0
    %v140 = vadd.f32 %v67, %v139
    %v141 = vpop.f32.mrb[0].mxu0
    %142 = vdwg.mxu0
    %v143 = vld [vmem:[%s4] sm:$0xff]
    %v144 = vld [vmem:[%s4 + $0x8] sm:$0xff]
    %v145 = vld [vmem:[%s4 + $0x10] sm:$0xff]
    %v146 = vld [vmem:[%s4 + $0x18] sm:$0xff]
    %vm147 = vcmask 261120
    %v149 = vsel %vm147, %v135, 0
    %v152 = vsel %vm147, %v140, 0
    %154 = vmatprep.subr.mxu0 0.0
    %155 = vmatpush1.msra.mxu0 %v143
    %156 = vmatprep.subr.mxu0 0.0
    %157 = vmatpush1.msra.mxu0 %v144
    %158 = vmatprep.subr.mxu0 0.0
    %159 = vmatpush1.msra.mxu0 %v145
    %160 = vmatprep.subr.mxu0 0.0
    %161 = vmatpush1.msra.mxu0 %v146
    %162 = vmatprep.subr.mxu0 0.0
    %163 = vmatpush1.msra.mxu0 0.0
    %164 = vmatprep.subr.mxu0 0.0
    %165 = vmatpush1.msra.mxu0 0.0
    %166 = vmatprep.subr.mxu0 0.0
    %167 = vmatpush1.msra.mxu0 0.0
    %168 = vmatprep.subr.mxu0 0.0
    %169 = vmatpush1.msra.mxu0 0.0
    %170 = vmatprep.subr.mxu0 0.0
    %171 = vmatpush1.msra.mxu0 0.0
    %172 = vmatprep.subr.mxu0 0.0
    %173 = vmatpush1.msra.mxu0 0.0
    %174 = vmatprep.subr.mxu0 0.0
    %175 = vmatpush1.msra.mxu0 0.0
    %176 = vmatprep.subr.mxu0 0.0
    %177 = vmatpush1.msra.mxu0 0.0
    %178 = vmatprep.subr.mxu0 0.0
    %179 = vmatpush1.msra.mxu0 0.0
    %180 = vmatprep.subr.mxu0 0.0
    %181 = vmatpush1.msra.mxu0 0.0
    %182 = vmatprep.subr.mxu0 0.0
    %183 = vmatpush1.msra.mxu0 0.0
    %184 = vmatprep.subr.mxu0 0.0
    %185 = vmatpush1.msra.mxu0 0.0
    %186 = vmatprep.subr.mxu0 0.0
    %187 = vmatpush1.msra.mxu0 0.0
    %188 = vmatprep.subr.mxu0 0.0
    %189 = vmatpush1.msra.mxu0 0.0
    %190 = vmatprep.subr.mxu0 0.0
    %191 = vmatpush1.msra.mxu0 0.0
    %192 = vmatprep.subr.mxu0 0.0
    %193 = vmatpush1.msra.mxu0 0.0
    %194 = vmatprep.subr.mxu0 0.0
    %195 = vmatpush1.msra.mxu0 0.0
    %196 = vmatprep.subr.mxu0 0.0
    %197 = vmatpush1.msra.mxu0 0.0
    %198 = vmatprep.subr.mxu0 0.0
    %199 = vmatpush1.msra.mxu0 0.0
    %200 = vmatprep.subr.mxu0 0.0
    %201 = vmatpush1.msra.mxu0 0.0
    %202 = vmatprep.subr.mxu0 0.0
    %203 = vmatpush1.msra.mxu0 0.0
    %204 = vmatprep.subr.mxu0 0.0
    %205 = vmatpush1.msra.mxu0 0.0
    %206 = vmatprep.subr.mxu0 0.0
    %207 = vmatpush1.msra.mxu0 0.0
    %208 = vmatprep.subr.mxu0 0.0
    %209 = vmatpush1.msra.mxu0 0.0
    %210 = vmatprep.subr.mxu0 0.0
    %211 = vmatpush1.msra.mxu0 0.0
    %212 = vmatprep.subr.mxu0 0.0
    %213 = vmatpush1.msra.mxu0 0.0
    %214 = vmatprep.subr.mxu0 0.0
    %215 = vmatpush1.msra.mxu0 0.0
    %216 = vmatprep.subr.mxu0 0.0
    %217 = vmatpush1.msra.mxu0 0.0
    %218 = vmatprep.mubr.f32.mxu0 0.0
    %219 = vmatmul.mubr.f32.gmra.mrb[0].mxu0 %v149
    %v220 = vpop.f32.mrb[0].mxu0
    %v221 = vadd.f32 0.0, %v220
    %v222 = vpop.f32.mrb[0].mxu0
    %223 = vmatprep.mubr.f32.mxu0 0.0
    %224 = vmatmul.mubr.f32.gmra.mrb[0].mxu0 %v152
    %v225 = vpop.f32.mrb[0].mxu0
    %v226 = vadd.f32 0.0, %v225
    %v227 = vpop.f32.mrb[0].mxu0
    %228 = vdwg.mxu0
    %231 = vrot.lane.b32.xlu0 %v221, 96
    %v232 = vpop.permute.xlu0 %231
    %233 = vrot.lane.b32.xlu0 %v226, 96
    %v234 = vpop.permute.xlu0 %233
    %v235 = vsel %vm147, %v221, 0
    %v237 = vsel %vm147, %v226, 0
    %v239 = vsel %vm147, %v232, 0
    %v241 = vsel %vm147, %v234, 0
    %243 = vmatprep.subr.mxu0 0.0
    %244 = vmatpush1.xpose.msra.mxu0 %v239
    %245 = vmatprep.subr.mxu0 0.0
    %246 = vmatpush1.xpose.msra.mxu0 %v241
    %247 = vmatprep.subr.mxu0 0.0
    %248 = vmatpush1.xpose.msra.mxu0 0.0
    %249 = vmatprep.subr.mxu0 0.0
    %250 = vmatpush1.xpose.msra.mxu0 0.0
    %251 = vmatprep.subr.mxu0 0.0
    %252 = vmatpush1.xpose.msra.mxu0 0.0
    %253 = vmatprep.subr.mxu0 0.0
    %254 = vmatpush1.xpose.msra.mxu0 0.0
    %255 = vmatprep.subr.mxu0 0.0
    %256 = vmatpush1.xpose.msra.mxu0 0.0
    %257 = vmatprep.subr.mxu0 0.0
    %258 = vmatpush1.xpose.msra.mxu0 0.0
    %259 = vmatprep.subr.mxu0 0.0
    %260 = vmatpush1.xpose.msra.mxu0 0.0
    %261 = vmatprep.subr.mxu0 0.0
    %262 = vmatpush1.xpose.msra.mxu0 0.0
    %263 = vmatprep.subr.mxu0 0.0
    %264 = vmatpush1.xpose.msra.mxu0 0.0
    %265 = vmatprep.subr.mxu0 0.0
    %266 = vmatpush1.xpose.msra.mxu0 0.0
    %267 = vmatprep.subr.mxu0 0.0
    %268 = vmatpush1.xpose.msra.mxu0 0.0
    %269 = vmatprep.subr.mxu0 0.0
    %270 = vmatpush1.xpose.msra.mxu0 0.0
    %271 = vmatprep.subr.mxu0 0.0
    %272 = vmatpush1.xpose.msra.mxu0 0.0
    %273 = vmatprep.subr.mxu0 0.0
    %274 = vmatpush1.xpose.msra.mxu0 0.0
    %275 = vmatprep.subr.mxu0 0.0
    %276 = vmatpush1.xpose.msra.mxu0 0.0
    %277 = vmatprep.subr.mxu0 0.0
    %278 = vmatpush1.xpose.msra.mxu0 0.0
    %279 = vmatprep.subr.mxu0 0.0
    %280 = vmatpush1.xpose.msra.mxu0 0.0
    %281 = vmatprep.subr.mxu0 0.0
    %282 = vmatpush1.xpose.msra.mxu0 0.0
    %283 = vmatprep.subr.mxu0 0.0
    %284 = vmatpush1.xpose.msra.mxu0 0.0
    %285 = vmatprep.subr.mxu0 0.0
    %286 = vmatpush1.xpose.msra.mxu0 0.0
    %287 = vmatprep.subr.mxu0 0.0
    %288 = vmatpush1.xpose.msra.mxu0 0.0
    %289 = vmatprep.subr.mxu0 0.0
    %290 = vmatpush1.xpose.msra.mxu0 0.0
    %291 = vmatprep.subr.mxu0 0.0
    %292 = vmatpush1.xpose.msra.mxu0 0.0
    %293 = vmatprep.subr.mxu0 0.0
    %294 = vmatpush1.xpose.msra.mxu0 0.0
    %295 = vmatprep.subr.mxu0 0.0
    %296 = vmatpush1.xpose.msra.mxu0 0.0
    %297 = vmatprep.subr.mxu0 0.0
    %298 = vmatpush1.xpose.msra.mxu0 0.0
    %299 = vmatprep.subr.mxu0 0.0
    %300 = vmatpush1.xpose.msra.mxu0 0.0
    %301 = vmatprep.subr.mxu0 0.0
    %302 = vmatpush1.xpose.msra.mxu0 0.0
    %303 = vmatprep.subr.mxu0 0.0
    %304 = vmatpush1.xpose.msra.mxu0 0.0
    %305 = vmatprep.subr.mxu0 0.0
    %306 = vmatpush1.xpose.msra.mxu0 0.0
    %307 = vmatprep.mubr.f32.mxu0 0.0
    %308 = vmatmul.mubr.f32.gmra.mrb[0].mxu0 %v235
    %v309 = vpop.f32.mrb[0].mxu0
    %v310 = vadd.f32 0.0, %v309
    %v311 = vpop.f32.mrb[0].mxu0
    %312 = vmatprep.mubr.f32.mxu0 0.0
    %313 = vmatmul.mubr.f32.gmra.mrb[0].mxu0 %v237
    %v314 = vpop.f32.mrb[0].mxu0
    %v315 = vadd.f32 0.0, %v314
    %v316 = vpop.f32.mrb[0].mxu0
    %317 = vdwg.mxu0
    %v318 = vmul.f32 %v310, 0.17677669
    %v319 = vmul.f32 %v315, 0.17677669
    %v320 = vld [vmem:[%s7] sm:$0xff]
    %v321 = vld [vmem:[%s7 + $0x8] sm:$0xff]
    %v322 = vadd.f32 %v318, %v320
    %v323 = vadd.f32 %v319, %v321
    %vm324 = vcmask 130048
    %v325 = vsel %vm324, %v322, -inf
    %326 = vmax.xlane.f32.xlu0 %v325
    %v327 = vpop.xlane.xlu0 %326
    %v328 = vsel %vm324, %v323, -inf
    %329 = vmax.xlane.f32.xlu0 %v328
    %v330 = vpop.xlane.xlu0 %329
    %v331 = vsub.f32 %v322, %v327
    %v332 = vsub.f32 %v323, %v330
    %v333 = vmul.f32 %v331, 1.442695
    %v334 = vpow.pop %v333
    %v335 = vmul.f32 %v332, 1.442695
    %v336 = vpow.pop %v335
    %v337 = vsel %vm324, %v334, 0.0
    %338 = vadd.xlane.f32.xlu0 %v337
    %v339 = vpop.xlane.xlu0 %338
    %v340 = vsel %vm324, %v336, 0.0
    %341 = vadd.xlane.f32.xlu0 %v340
    %v342 = vpop.xlane.xlu0 %341
    %v343 = vrcp.pop %v339
    %v344 = vrcp.pop %v342
    %v345 = vmul.f32 %v334, %v343
    %v346 = vmul.f32 %v336, %v344
    %347 = vrot.lane.b32.xlu0 %v221, 64
    %v348 = vpop.permute.xlu0 %347
    %349 = vrot.lane.b32.xlu0 %v226, 64
    %v350 = vpop.permute.xlu0 %349
    %v354 = vsel %vm324, %v345, 0
    %v357 = vsel %vm324, %v346, 0
    %359 = vmatprep.subr.mxu0 0.0
    %360 = vmatpush1.msra.mxu0 %v348
    %361 = vmatprep.subr.mxu0 0.0
    %362 = vmatpush1.msra.mxu0 %v350
    %363 = vmatprep.subr.mxu0 0.0
    %364 = vmatpush1.msra.mxu0 0.0
    %365 = vmatprep.subr.mxu0 0.0
    %366 = vmatpush1.msra.mxu0 0.0
    %367 = vmatprep.subr.mxu0 0.0
    %368 = vmatpush1.msra.mxu0 0.0
    %369 = vmatprep.subr.mxu0 0.0
    %370 = vmatpush1.msra.mxu0 0.0
    %371 = vmatprep.subr.mxu0 0.0
    %372 = vmatpush1.msra.mxu0 0.0
    %373 = vmatprep.subr.mxu0 0.0
    %374 = vmatpush1.msra.mxu0 0.0
    %375 = vmatprep.subr.mxu0 0.0
    %376 = vmatpush1.msra.mxu0 0.0
    %377 = vmatprep.subr.mxu0 0.0
    %378 = vmatpush1.msra.mxu0 0.0
    %379 = vmatprep.subr.mxu0 0.0
    %380 = vmatpush1.msra.mxu0 0.0
    %381 = vmatprep.subr.mxu0 0.0
    %382 = vmatpush1.msra.mxu0 0.0
    %383 = vmatprep.subr.mxu0 0.0
    %384 = vmatpush1.msra.mxu0 0.0
    %385 = vmatprep.subr.mxu0 0.0
    %386 = vmatpush1.msra.mxu0 0.0
    %387 = vmatprep.subr.mxu0 0.0
    %388 = vmatpush1.msra.mxu0 0.0
    %389 = vmatprep.subr.mxu0 0.0
    %390 = vmatpush1.msra.mxu0 0.0
    %391 = vmatprep.subr.mxu0 0.0
    %392 = vmatpush1.msra.mxu0 0.0
    %393 = vmatprep.subr.mxu0 0.0
    %394 = vmatpush1.msra.mxu0 0.0
    %395 = vmatprep.subr.mxu0 0.0
    %396 = vmatpush1.msra.mxu0 0.0
    %397 = vmatprep.subr.mxu0 0.0
    %398 = vmatpush1.msra.mxu0 0.0
    %399 = vmatprep.subr.mxu0 0.0
    %400 = vmatpush1.msra.mxu0 0.0
    %401 = vmatprep.subr.mxu0 0.0
    %402 = vmatpush1.msra.mxu0 0.0
    %403 = vmatprep.subr.mxu0 0.0
    %404 = vmatpush1.msra.mxu0 0.0
    %405 = vmatprep.subr.mxu0 0.0
    %406 = vmatpush1.msra.mxu0 0.0
    %407 = vmatprep.subr.mxu0 0.0
    %408 = vmatpush1.msra.mxu0 0.0
    %409 = vmatprep.subr.mxu0 0.0
    %410 = vmatpush1.msra.mxu0 0.0
    %411 = vmatprep.subr.mxu0 0.0
    %412 = vmatpush1.msra.mxu0 0.0
    %413 = vmatprep.subr.mxu0 0.0
    %414 = vmatpush1.msra.mxu0 0.0
    %415 = vmatprep.subr.mxu0 0.0
    %416 = vmatpush1.msra.mxu0 0.0
    %417 = vmatprep.subr.mxu0 0.0
    %418 = vmatpush1.msra.mxu0 0.0
    %419 = vmatprep.subr.mxu0 0.0
    %420 = vmatpush1.msra.mxu0 0.0
    %421 = vmatprep.subr.mxu0 0.0
    %422 = vmatpush1.msra.mxu0 0.0
    %423 = vmatprep.mubr.f32.mxu0 0.0
    %424 = vmatmul.mubr.f32.gmra.mrb[0].mxu0 %v354
    %v425 = vpop.f32.mrb[0].mxu0
    %v426 = vadd.f32 0.0, %v425
    %v427 = vpop.f32.mrb[0].mxu0
    %428 = vmatprep.mubr.f32.mxu0 0.0
    %429 = vmatmul.mubr.f32.gmra.mrb[0].mxu0 %v357
    %v430 = vpop.f32.mrb[0].mxu0
    %v431 = vadd.f32 0.0, %v430
    %v432 = vpop.f32.mrb[0].mxu0
    %433 = vdwg.mxu0
    %v434 = vld [vmem:[%s5] sm:$0xff]
    %v435 = vld [vmem:[%s5 + $0x8] sm:$0xff]
    %v436 = vld [vmem:[%s5 + $0x10] sm:$0xff]
    %v437 = vld [vmem:[%s5 + $0x18] sm:$0xff]
    %v438 = vld [vmem:[%s6] sm:$0x1]
    %v440 = vlaneseq
    %v441 = vshrl.u32 %v440, 7
    %v442 = vsub.s32 0, %v441
    %v443 = vrot.slane %v438, %v442
    %v446 = vsel %vm147, %v426, 0
    %v449 = vsel %vm147, %v431, 0
    %451 = vmatprep.subr.mxu0 0.0
    %452 = vmatpush1.msra.mxu0 %v434
    %453 = vmatprep.subr.mxu0 0.0
    %454 = vmatpush1.msra.mxu0 %v435
    %455 = vmatprep.subr.mxu0 0.0
    %456 = vmatpush1.msra.mxu0 %v436
    %457 = vmatprep.subr.mxu0 0.0
    %458 = vmatpush1.msra.mxu0 %v437
    %459 = vmatprep.subr.mxu0 0.0
    %460 = vmatpush1.msra.mxu0 0.0
    %461 = vmatprep.subr.mxu0 0.0
    %462 = vmatpush1.msra.mxu0 0.0
    %463 = vmatprep.subr.mxu0 0.0
    %464 = vmatpush1.msra.mxu0 0.0
    %465 = vmatprep.subr.mxu0 0.0
    %466 = vmatpush1.msra.mxu0 0.0
    %467 = vmatprep.subr.mxu0 0.0
    %468 = vmatpush1.msra.mxu0 0.0
    %469 = vmatprep.subr.mxu0 0.0
    %470 = vmatpush1.msra.mxu0 0.0
    %471 = vmatprep.subr.mxu0 0.0
    %472 = vmatpush1.msra.mxu0 0.0
    %473 = vmatprep.subr.mxu0 0.0
    %474 = vmatpush1.msra.mxu0 0.0
    %475 = vmatprep.subr.mxu0 0.0
    %476 = vmatpush1.msra.mxu0 0.0
    %477 = vmatprep.subr.mxu0 0.0
    %478 = vmatpush1.msra.mxu0 0.0
    %479 = vmatprep.subr.mxu0 0.0
    %480 = vmatpush1.msra.mxu0 0.0
    %481 = vmatprep.subr.mxu0 0.0
    %482 = vmatpush1.msra.mxu0 0.0
    %483 = vmatprep.subr.mxu0 0.0
    %484 = vmatpush1.msra.mxu0 0.0
    %485 = vmatprep.subr.mxu0 0.0
    %486 = vmatpush1.msra.mxu0 0.0
    %487 = vmatprep.subr.mxu0 0.0
    %488 = vmatpush1.msra.mxu0 0.0
    %489 = vmatprep.subr.mxu0 0.0
    %490 = vmatpush1.msra.mxu0 0.0
    %491 = vmatprep.subr.mxu0 0.0
    %492 = vmatpush1.msra.mxu0 0.0
    %493 = vmatprep.subr.mxu0 0.0
    %494 = vmatpush1.msra.mxu0 0.0
    %495 = vmatprep.subr.mxu0 0.0
    %496 = vmatpush1.msra.mxu0 0.0
    %497 = vmatprep.subr.mxu0 0.0
    %498 = vmatpush1.msra.mxu0 0.0
    %499 = vmatprep.subr.mxu0 0.0
    %500 = vmatpush1.msra.mxu0 0.0
    %501 = vmatprep.subr.mxu0 0.0
    %502 = vmatpush1.msra.mxu0 0.0
    %503 = vmatprep.subr.mxu0 0.0
    %504 = vmatpush1.msra.mxu0 0.0
    %505 = vmatprep.subr.mxu0 0.0
    %506 = vmatpush1.msra.mxu0 0.0
    %507 = vmatprep.subr.mxu0 0.0
    %508 = vmatpush1.msra.mxu0 0.0
    %509 = vmatprep.subr.mxu0 0.0
    %510 = vmatpush1.msra.mxu0 0.0
    %511 = vmatprep.subr.mxu0 0.0
    %512 = vmatpush1.msra.mxu0 0.0
    %513 = vmatprep.subr.mxu0 0.0
    %514 = vmatpush1.msra.mxu0 0.0
    %515 = vmatprep.mubr.f32.mxu0 0.0
    %516 = vmatmul.mubr.f32.gmra.mrb[0].mxu0 %v446
    %v517 = vpop.f32.mrb[0].mxu0
    %v518 = vadd.f32 %v443, %v517
    %v519 = vpop.f32.mrb[0].mxu0
    %520 = vmatprep.mubr.f32.mxu0 0.0
    %521 = vmatmul.mubr.f32.gmra.mrb[0].mxu0 %v449
    %v522 = vpop.f32.mrb[0].mxu0
    %v523 = vadd.f32 %v443, %v522
    %v524 = vpop.f32.mrb[0].mxu0
    %525 = vdwg.mxu0
    %526 = vst [vmem:[#allocation2] sm:$0xff] %v518
    %527 = vst [vmem:[#allocation2 + $0x8] sm:$0xff] %v523
    %vm528 = vcmp.lt.s32.totalorder %v38, 64
    %v529 = vsel %vm528, %v518, -1e+30
    %v530 = vsel %vm528, %v523, -1e+30
    %531 = vmax.xlane.f32.xlu0 %v529
    %v532 = vpop.xlane.xlu0 %531
    %533 = vmax.xlane.f32.xlu0 %v530
    %v534 = vpop.xlane.xlu0 %533
    %v535 = vsub.f32 %v529, %v532
    %v536 = vsub.f32 %v530, %v534
    %v537 = vmul.f32 %v535, 1.442695
    %v538 = vpow.pop %v537
    %v539 = vmul.f32 %v536, 1.442695
    %v540 = vpow.pop %v539
    %541 = vadd.xlane.f32.xlu0 %v538
    %v542 = vpop.xlane.xlu0 %541
    %543 = vadd.xlane.f32.xlu0 %v540
    %v544 = vpop.xlane.xlu0 %543
    %v545 = vlog2.pop %v542
    %v546 = vmul.f32 %v545, 0.6931472
    %v547 = vlog2.pop %v544
    %v548 = vmul.f32 %v547, 0.6931472
    %v549 = vadd.f32 %v546, %v532
    %v550 = vadd.f32 %v548, %v534
    %551 = vset.pattern.permute.xlu0 0
    %552 = vperm.xlu0 %551, %v35
    %v553 = vpop.permute.xlu0 %552
    %554 = vset.pattern.permute.xlu0 0
    %555 = vperm.xlu0 %554, %v36
    %v556 = vpop.permute.xlu0 %555
    %vm557 = vcmp.eq.s32.totalorder %v38, %v553
    %vm558 = vcmp.eq.s32.totalorder %v38, %v556
    %v559 = vsel %vm557, %v518, 0.0
    %v560 = vsel %vm558, %v523, 0.0
    %561 = vadd.xlane.f32.xlu0 %v559
    %v562 = vpop.xlane.xlu0 %561
    %563 = vadd.xlane.f32.xlu0 %v560
    %v564 = vpop.xlane.xlu0 %563
    %v565 = vsub.f32 %v549, %v562
    %v566 = vsub.f32 %v550, %v564
    %v567 = vadd.f32 %v565, %v566
    %v568 = vrot.slane %v567, 4
    %v569 = vadd.f32 %v567, %v568
    %v570 = vrot.slane %v569, 2
    %v571 = vadd.f32 %v569, %v570
    %v572 = vrot.slane %v571, 1
    %v573 = vadd.f32 %v571, %v572
    %v574 = vmul.f32 %v573, 0.0625
    %575 = vst [vmem:[#allocation4] sm:$0x1] %v574
    // Predicated region
    $region34: #{tpu_custom_call.1} parent=1 // pred_check
      _
    $region35: #{tpu_custom_call.1} parent=1 // pred_check_branch
      %577 = sbr.rel (0) target = $region37
    $region36: #{tpu_custom_call.1} parent=1 // pred_region
      %s579 = ssub.s32 256, 256
      %580 = vsyncadd [#allocation3], %s579
      %s581 = sshll.u32 [#allocation2], 4
      %s582 = int_to_ptr.vmem [resolvable:$true] %s581
      %587 = dma.vmem_to_hbm [thread:$0]  %s582, 256, %s8, [#allocation3], 128, 128, 8
    $region37: #{tpu_custom_call.1} parent=1 // pred_fallthru
      _
    // Predicated region
    $region38: #{tpu_custom_call.1} parent=1 // pred_check
      _
    $region39: #{tpu_custom_call.1} parent=1 // pred_check_branch
      %589 = sbr.rel (0) target = $region41
    $region40: #{tpu_custom_call.1} parent=1 // pred_region
      %s591 = ssub.s32 16, 16
      %592 = vsyncadd [#allocation5], %s591
      %s594 = sshll.u32 [#allocation4], 4
      %s595 = int_to_ptr.vmem [resolvable:$true] %s594
      %597 = dma.vmem_to_hbm [thread:$0]  %s595, 16, %s9, [#allocation5]
    $region41: #{tpu_custom_call.1} parent=1 // pred_fallthru
      _
    // Predicated region
    $region42: #{tpu_custom_call.1} parent=1 // pred_check
      _
    $region43: #{tpu_custom_call.1} parent=1 // pred_check_branch
      %599 = sbr.rel (0) target = $region45
    $region44: #{tpu_custom_call.1} parent=1 // pred_region
      %600 = dma.done [#allocation3], 256
    $region45: #{tpu_custom_call.1} parent=1 // pred_fallthru
      _
    // Predicated region
    $region46: #{tpu_custom_call.1} parent=1 // pred_check
      _
    $region47: #{tpu_custom_call.1} parent=1 // pred_check_branch
      %602 = sbr.rel (0) target = $region49
    $region48: #{tpu_custom_call.1} parent=1 // pred_region
      %603 = dma.done [#allocation5], 16
    $region49: #{tpu_custom_call.1} parent=1 // pred_fallthru
      _
    %604 = vsyncpa [#allocation3], 1
    %605 = vsyncpa [#allocation5], 1

</llo_original>
